<compile_context>
chip_gen: v7x
topology: tpu7x:2x2x1
jax: 0.10.0
libtpu: 0.0.40
codegen_flags: <defaults>
</compile_context>

<pallas_src>
import functools

import jax
import jax.numpy as jnp
from jax.experimental import pallas as pl
from jax.experimental.pallas import tpu as pltpu

LANES = 128
MAX_ROW_TILE = 2048   # (2048,128) f32 block = 1 MiB; 2 operands x 2 buffers = 4 MiB
NUM_CORES = 2         # use both TCs on v7x; harmless (sequential) on 1-TC chips


def _round_up(x, m):
    return (x + m - 1) // m * m


def _rmse_partial_kernel(yhat_ref, y_ref, o_ref, *, rows, row_tile,
                         tiles_per_core, needs_mask):
    c = pl.program_id(0)   # core / partial-sum slot   (parallel)
    j = pl.program_id(1)   # row-tile within this core (arbitrary / reduction)

    @pl.when(j == 0)
    def _():
        o_ref[...] = jnp.zeros_like(o_ref)

    d = yhat_ref[...].astype(jnp.float32) - y_ref[...].astype(jnp.float32)
    sq = d * d

    if needs_mask:
        # Zero rows past the true end of the data: the partial final tile and
        # any whole tiles assigned (and index-clamped) past the end.  Masking
        # the squared diff guarantees garbage rows contribute exactly 0.
        tile_idx = c * tiles_per_core + j
        valid_rows = rows - tile_idx * row_tile            # scalar, may be <= 0
        row_idx = jax.lax.broadcasted_iota(jnp.int32, sq.shape, 0)
        sq = jnp.where(row_idx < valid_rows, sq, 0.0)

    # Collapse (row_tile, 128) onto the resident (8, 128) accumulator with
    # vreg-aligned VPU adds only; the cross-lane reduce happens in the wrapper.
    o_ref[0] += jnp.sum(sq.reshape(-1, 8, LANES), axis=0)


def rmse(yhat, y, eps=1e-6, *, max_row_tile=MAX_ROW_TILE):
    """sqrt(mean((yhat - y)^2) + eps), matching torch.sqrt(MSELoss()(yhat, y) + eps)."""
    assert yhat.shape == y.shape, "yhat / y must have identical shapes"
    n_total = yhat.size
    assert n_total > 0, "RMSE of empty tensors is undefined"

    yhat_f = yhat.reshape(-1)   # keep native dtype; kernel upcasts per tile
    y_f = y.reshape(-1)

    # Pad only to a lane multiple (<= 127 elements) when needed; identical zero
    # padding on both operands contributes 0 to the sum of squared differences.
    rem = n_total % LANES
    if rem:
        pad = LANES - rem
        yhat_f = jnp.pad(yhat_f, (0, pad))
        y_f = jnp.pad(y_f, (0, pad))
    rows = yhat_f.size // LANES

    # Sublane granularity: 8 rows for 4-byte dtypes, 16 for 2-byte, 32 for 1-byte.
    itemsize = min(jnp.dtype(yhat.dtype).itemsize, jnp.dtype(y.dtype).itemsize)
    sub = {4: 8, 2: 16, 1: 32}.get(itemsize, 8)
    row_tile = min(_round_up(max_row_tile, sub), _round_up(rows, sub))

    yhat_2d = yhat_f.reshape(rows, LANES)
    y_2d = y_f.reshape(rows, LANES)

    num_tiles = pl.cdiv(rows, row_tile)
    num_cores = NUM_CORES if num_tiles >= NUM_CORES else 1
    tiles_per_core = pl.cdiv(num_tiles, num_cores)
    needs_mask = (num_cores * tiles_per_core * row_tile) != rows

    if num_cores * tiles_per_core > num_tiles:
        # A core may be assigned tiles past the end: clamp the block index to a
        # valid block; the in-kernel row mask zeroes that block's contribution.
        def in_index_map(c, j):
            return (jnp.minimum(c * tiles_per_core + j, num_tiles - 1), 0)
    else:
        def in_index_map(c, j):
            return (c * tiles_per_core + j, 0)

    kernel = functools.partial(
        _rmse_partial_kernel,
        rows=rows,
        row_tile=row_tile,
        tiles_per_core=tiles_per_core,
        needs_mask=needs_mask,
    )

    partials = pl.pallas_call(
        kernel,
        out_shape=jax.ShapeDtypeStruct((num_cores, 8, LANES), jnp.float32),
        grid=(num_cores, tiles_per_core),
        in_specs=[
            pl.BlockSpec((row_tile, LANES), in_index_map),
            pl.BlockSpec((row_tile, LANES), in_index_map),
        ],
        out_specs=pl.BlockSpec((1, 8, LANES), lambda c, j: (c, 0, 0)),
        compiler_params=pltpu.CompilerParams(
            dimension_semantics=("parallel", "arbitrary"),
        ),
    )(yhat_2d, y_2d)

    mse = jnp.sum(partials) / jnp.float32(n_total)
    return jnp.sqrt(mse + jnp.float32(eps))


if __name__ == "__main__":
    key = jax.random.PRNGKey(0)
    k1, k2, k3, k4 = jax.random.split(key, 4)

    # Primary check: small NCHW f32 inputs, as the module implies.
    shape = (2, 4, 16, 16)
    yhat = jax.random.normal(k1, shape, dtype=jnp.float32)
    y = jax.random.normal(k2, shape, dtype=jnp.float32)
    loss = rmse(yhat, y, eps=1e-6)
    jax.block_until_ready(loss)
    ref = jnp.sqrt(jnp.mean((yhat - y) ** 2) + 1e-6)
    assert jnp.allclose(loss, ref, rtol=1e-5, atol=1e-6), (loss, ref)

    # Exercise the multi-tile / two-partial-sum / masked-remainder / clamped
    # path with a deliberately tiny row tile (still small data).
    shape2 = (1, 1, 48, 48)
    a = jax.random.normal(k3, shape2, dtype=jnp.float32)
    b = jax.random.normal(k4, shape2, dtype=jnp.float32)
    loss2 = rmse(a, b, eps=1e-6, max_row_tile=8)
    jax.block_until_ready(loss2)
    ref2 = jnp.sqrt(jnp.mean((a - b) ** 2) + 1e-6)
    assert jnp.allclose(loss2, ref2, rtol=1e-5, atol=1e-6), (loss2, ref2)

    # Native bf16 inputs: no wrapper upcast, kernel accumulates in f32.
    yhat_bf = yhat.astype(jnp.bfloat16)
    y_bf = y.astype(jnp.bfloat16)
    loss3 = rmse(yhat_bf, y_bf, eps=1e-6)
    jax.block_until_ready(loss3)
    d = yhat_bf.astype(jnp.float32) - y_bf.astype(jnp.float32)
    ref3 = jnp.sqrt(jnp.mean(d * d) + 1e-6)
    assert jnp.allclose(loss3, ref3, rtol=1e-4, atol=1e-6), (loss3, ref3)

    print("KERNEL_OK")
</pallas_src>

<mosaic_0001>
module attributes {stable_mosaic.version = 11 : i64} {
  func.func @_rmse_partial_kernel(%arg0: i32, %arg1: i32, %arg2: memref<16x128xf32, #tpu.memory_space<vmem>>, %arg3: memref<16x128xf32, #tpu.memory_space<vmem>>, %arg4: memref<1x8x128xf32, #tpu.memory_space<vmem>>) attributes {dimension_semantics = [#tpu.dimension_semantics<parallel>, #tpu.dimension_semantics<arbitrary>], iteration_bounds = array<i64: 1, 1>, scalar_prefetch = 0 : i64, scratch_operands = 0 : i64, tpu.core_type = #tpu.core_type<tc>, window_params = [{transform_indices = @transform_0, window_bounds = array<i64: 16, 128>}, {transform_indices = @transform_1, window_bounds = array<i64: 16, 128>}, {transform_indices = @transform_2, window_bounds = array<i64: 1, 8, 128>}]} {
    %c0_i32 = arith.constant 0 : i32
    %0 = arith.cmpi eq, %arg1, %c0_i32 : i32
    %1 = arith.extui %0 : i1 to i32
    %c0_i32_0 = arith.constant 0 : i32
    %2 = arith.cmpi ne, %1, %c0_i32_0 : i32
    scf.if %2 {
      %cst_10 = arith.constant 0.000000e+00 : f32
      %15 = vector.broadcast %cst_10 : f32 to vector<1x8x128xf32>
      %c0_11 = arith.constant 0 : index
      %c0_12 = arith.constant 0 : index
      %c0_13 = arith.constant 0 : index
      %16 = vector.load %arg4[%c0_11, %c0_12, %c0_13] : memref<1x8x128xf32, #tpu.memory_space<vmem>>, vector<1x8x128xf32>
      tpu.vector_store %arg4[%c0_11, %c0_12, %c0_13], %15 {strides = array<i32>} : memref<1x8x128xf32, #tpu.memory_space<vmem>>, vector<1x8x128xf32>,
    } else {
    }
    %c0 = arith.constant 0 : index
    %c0_1 = arith.constant 0 : index
    %3 = vector.load %arg2[%c0, %c0_1] : memref<16x128xf32, #tpu.memory_space<vmem>>, vector<16x128xf32>
    %c0_2 = arith.constant 0 : index
    %c0_3 = arith.constant 0 : index
    %4 = vector.load %arg3[%c0_2, %c0_3] : memref<16x128xf32, #tpu.memory_space<vmem>>, vector<16x128xf32>
    %5 = arith.subf %3, %4 : vector<16x128xf32>
    %6 = arith.mulf %5, %5 : vector<16x128xf32>
    %c0_4 = arith.constant 0 : index
    %c0_5 = arith.constant 0 : index
    %c0_6 = arith.constant 0 : index
    %7 = vector.load %arg4[%c0_4, %c0_5, %c0_6] : memref<1x8x128xf32, #tpu.memory_space<vmem>>, vector<1x8x128xf32>
    %8 = vector.shape_cast %7 : vector<1x8x128xf32> to vector<8x128xf32>
    %9 = vector.shape_cast %6 : vector<16x128xf32> to vector<2x8x128xf32>
    %cst = arith.constant dense<0.000000e+00> : vector<8x128xf32>
    %10 = vector.multi_reduction <add>, %9, %cst [0] : vector<2x8x128xf32> to vector<8x128xf32>
    %11 = arith.addf %8, %10 : vector<8x128xf32>
    %c0_7 = arith.constant 0 : index
    %c0_8 = arith.constant 0 : index
    %c0_9 = arith.constant 0 : index
    %12 = vector.load %arg4[%c0_7, %c0_8, %c0_9] : memref<1x8x128xf32, #tpu.memory_space<vmem>>, vector<1x8x128xf32>
    %13 = vector.shape_cast %12 : vector<1x8x128xf32> to vector<8x128xf32>
    %14 = vector.shape_cast %11 : vector<8x128xf32> to vector<1x8x128xf32>
    tpu.vector_store %arg4[%c0_7, %c0_8, %c0_9], %14 {strides = array<i32>} : memref<1x8x128xf32, #tpu.memory_space<vmem>>, vector<1x8x128xf32>,
    return
  }
  func.func @transform_0(%arg0: i32, %arg1: i32) -> (i32, i32) {
    %c1_i32 = arith.constant 1 : i32
    %0 = arith.muli %arg0, %c1_i32 : i32
    %1 = arith.addi %0, %arg1 : i32
    %c0_i32 = arith.constant 0 : i32
    %c0_i32_0 = arith.constant 0 : i32
    return %1, %c0_i32 : i32, i32
  }
  func.func @transform_1(%arg0: i32, %arg1: i32) -> (i32, i32) {
    %c1_i32 = arith.constant 1 : i32
    %0 = arith.muli %arg0, %c1_i32 : i32
    %1 = arith.addi %0, %arg1 : i32
    %c0_i32 = arith.constant 0 : i32
    %c0_i32_0 = arith.constant 0 : i32
    return %1, %c0_i32 : i32, i32
  }
  func.func @transform_2(%arg0: i32, %arg1: i32) -> (i32, i32, i32) {
    %c0_i32 = arith.constant 0 : i32
    %c0_i32_0 = arith.constant 0 : i32
    %c0_i32_1 = arith.constant 0 : i32
    return %arg0, %c0_i32, %c0_i32_0 : i32, i32, i32
  }
}

</mosaic_0001>

<llo_original>
// kernel: tpu_custom_call.1
$region0: #{tpu_custom_call.1}
  #allocation0 [shape = 'u32[]', space=smem, size = 0x4, offset = 0x4, fixed_abs, tag = 'smem constant byte address 0x4 - core index']
  #allocation1 [shape = 'u32[144,128]{1,0:T(1,128)}', space=vmem, size = 0x12000, scoped, tag = 'internal scratch']
  %s0 = inlined_call_operand.hbm [shape: f32[16,128], index: 0, kind: input, shape index: {}]
  %s1 = inlined_call_operand.hbm [shape: f32[16,128], index: 1, kind: input, shape index: {}]
  %s2 = inlined_call_operand.hbm [shape: f32[1,8,128], index: 2, kind: output, shape index: {}]
  %s3 = sld [smem:[#allocation0]]
  $region30: #{tpu_custom_call.1} parent=0
    _
  %s5 = ssub.s32 1, %s3
  %s6 = scalar_select 0, %s5, %s3
  $region1: #{tpu_custom_call.1} parent=0
    #allocation2 [shape = 'u8[8192]{0}', space=vmem, size = 0x2000, scoped, tag = 'input window, operand 0, single buffered']
    #allocation3 [shape = 's32[1]{0}', space=sflag, size = 0x4, scoped, tag = 'scoped memory for tpu_custom_call.1']
    #allocation4 [shape = 's32[1]{0}', space=sflag, size = 0x4, scoped, tag = 'scoped memory for tpu_custom_call.1']
    #allocation5 [shape = 'u8[8192]{0}', space=vmem, size = 0x2000, scoped, tag = 'input window, operand 1, single buffered']
    #allocation6 [shape = 's32[1]{0}', space=sflag, size = 0x4, scoped, tag = 'scoped memory for tpu_custom_call.1']
    #allocation7 [shape = 'u8[4096]{0}', space=vmem, size = 0x1000, scoped, tag = 'output window, operand 0, single buffered']
    %7 = vsyncpa [#allocation3], 0
    %8 = vsyncpa [#allocation6], 0
    %9 = vsyncpa [#allocation4], 0
    // Predicated region
    $region2: #{tpu_custom_call.1} parent=1 // pred_check
      _
    $region3: #{tpu_custom_call.1} parent=1 // pred_check_branch
      %11 = sbr.rel (0) target = $region5
    $region4: #{tpu_custom_call.1} parent=1 // pred_region
      %s12 = sadd.s32 0, 0
      %s13 = smul.u32 2, %s12
      %s15 = ssub.s32 256, 256
      %16 = vsyncadd [#allocation3], %s15
      %s17 = smul.addr %s13, 128
      %s18 = scalar_lea.hbm %s0, %s17
      %s19 = sshll.u32 [#allocation2], 4
      %s20 = int_to_ptr.vmem [resolvable:$true] %s19
      %25 = dma.hbm_to_vmem [thread:$0]  %s18, 256, %s20, [#allocation3], 128, 128, 8
    $region5: #{tpu_custom_call.1} parent=1 // pred_fallthru
      _
    // Predicated region
    $region6: #{tpu_custom_call.1} parent=1 // pred_check
      _
    $region7: #{tpu_custom_call.1} parent=1 // pred_check_branch
      %27 = sbr.rel (0) target = $region9
    $region8: #{tpu_custom_call.1} parent=1 // pred_region
      %s28 = sadd.s32 0, 0
      %s29 = smul.u32 2, %s28
      %s31 = ssub.s32 256, 256
      %32 = vsyncadd [#allocation6], %s31
      %s33 = smul.addr %s29, 128
      %s34 = scalar_lea.hbm %s1, %s33
      %s35 = sshll.u32 [#allocation5], 4
      %s36 = int_to_ptr.vmem [resolvable:$true] %s35
      %41 = dma.hbm_to_vmem [thread:$0]  %s34, 256, %s36, [#allocation6], 128, 128, 8
    $region9: #{tpu_custom_call.1} parent=1 // pred_fallthru
      _
    // Predicated region
    $region10: #{tpu_custom_call.1} parent=1 // pred_check
      _
    $region11: #{tpu_custom_call.1} parent=1 // pred_check_branch
      %43 = sbr.rel (0) target = $region13
    $region12: #{tpu_custom_call.1} parent=1 // pred_region
      %44 = dma.done [#allocation3], 256
    $region13: #{tpu_custom_call.1} parent=1 // pred_fallthru
      _
    // Predicated region
    $region14: #{tpu_custom_call.1} parent=1 // pred_check
      _
    $region15: #{tpu_custom_call.1} parent=1 // pred_check_branch
      %46 = sbr.rel (0) target = $region17
    $region16: #{tpu_custom_call.1} parent=1 // pred_region
      %47 = dma.done [#allocation6], 256
    $region17: #{tpu_custom_call.1} parent=1 // pred_fallthru
      _
    %s48 = sadd.s32 0, 0
    %s49 = smul.u32 2, %s48
    %s50 = sadd.s32 0, 0
    %s51 = smul.u32 2, %s50
    %p52 = scmp.eq.s32.totalorder 0, 0
    // Predicated region
    $region18: #{tpu_custom_call.1} parent=1 // pred_check
      %p53 = pneg %p52
    $region19: #{tpu_custom_call.1} parent=1 // pred_check_branch
      %55 = sbr.rel (%p53) target = $region21
    $region20: #{tpu_custom_call.1} parent=1 // pred_region
      %56 = vst [vmem:[#allocation7] sm:$0xff] 0.0
    $region21: #{tpu_custom_call.1} parent=1 // pred_fallthru
      _
    %v57 = vld [vmem:[#allocation2] sm:$0xff]
    %v58 = vld [vmem:[#allocation2 + $0x8] sm:$0xff]
    %v59 = vld [vmem:[#allocation5] sm:$0xff]
    %v60 = vld [vmem:[#allocation5 + $0x8] sm:$0xff]
    %v61 = vsub.f32 %v57, %v59
    %v62 = vsub.f32 %v58, %v60
    %v63 = vmul.f32 %v61, %v61
    %v64 = vmul.f32 %v62, %v62
    %v65 = vld [vmem:[#allocation7] sm:$0xff]
    %v66 = vadd.f32 %v63, %v64
    %v67 = vadd.f32 %v65, %v66
    %68 = vst [vmem:[#allocation7] sm:$0xff] %v67
    // Predicated region
    $region22: #{tpu_custom_call.1} parent=1 // pred_check
      _
    $region23: #{tpu_custom_call.1} parent=1 // pred_check_branch
      %70 = sbr.rel (0) target = $region25
    $region24: #{tpu_custom_call.1} parent=1 // pred_region
      %s72 = ssub.s32 128, 128
      %73 = vsyncadd [#allocation4], %s72
      %s75 = sshll.u32 [#allocation7], 4
      %s76 = int_to_ptr.vmem [resolvable:$true] %s75
      %78 = dma.vmem_to_hbm [thread:$0]  %s76, 128, %s2, [#allocation4]
    $region25: #{tpu_custom_call.1} parent=1 // pred_fallthru
      _
    // Predicated region
    $region26: #{tpu_custom_call.1} parent=1 // pred_check
      _
    $region27: #{tpu_custom_call.1} parent=1 // pred_check_branch
      %80 = sbr.rel (0) target = $region29
    $region28: #{tpu_custom_call.1} parent=1 // pred_region
      %81 = dma.done [#allocation4], 128
    $region29: #{tpu_custom_call.1} parent=1 // pred_fallthru
      _
    %82 = vsyncpa [#allocation3], 1
    %83 = vsyncpa [#allocation6], 1
    %84 = vsyncpa [#allocation4], 1

</llo_original>
